<compile_context>
chip_gen: v6e
topology: v6e:2x2x1
jax: 0.10.0
libtpu: 0.0.40
codegen_flags: <defaults>
</compile_context>

<pallas_src>
import functools

import jax
import jax.numpy as jnp
from jax import lax
from jax.experimental import pallas as pl
from jax.experimental.pallas import tpu as pltpu


def _sigmoid(z):
    return 1.0 / (1.0 + jnp.exp(-z))


# ----------------------- kernel 1: rolling (Open) LSTM -----------------------
def rolling_lstm_kernel(x_ref, wx_ref, wh_ref, b_ref,
                        h_out_ref, c_out_ref, h_scr, c_scr):
    # x_ref: (1, B, F); wx_ref: (4, F, H); wh_ref: (4, H, H); b_ref: (4, 1, H)
    t = pl.program_id(0)

    @pl.when(t == 0)
    def _():
        h_scr[...] = jnp.zeros_like(h_scr)
        c_scr[...] = jnp.zeros_like(c_scr)

    x_t = x_ref[0]          # (B, F)
    h = h_scr[...]
    c = c_scr[...]

    def gate(k):
        return (jnp.dot(x_t, wx_ref[k], preferred_element_type=jnp.float32)
                + jnp.dot(h, wh_ref[k], preferred_element_type=jnp.float32)
                + b_ref[k])

    i = _sigmoid(gate(0))   # PyTorch LSTM gate order: i, f, g, o
    f = _sigmoid(gate(1))
    g = jnp.tanh(gate(2))
    o = _sigmoid(gate(3))
    c_new = f * c + i * g
    h_new = o * jnp.tanh(c_new)

    h_scr[...] = h_new
    c_scr[...] = c_new
    h_out_ref[0] = h_new
    c_out_ref[0] = c_new


# -------------- kernel 2: unrolling LSTM + classifier (fused) ----------------
def unrolling_kernel(T_total, x_ref, h0_ref, c0_ref, wx_ref, wh_ref, b_ref,
                     wcls_ref, bcls_ref, y_ref, pred_ref):
    t = pl.program_id(0)
    n_steps = (T_total - t) + 1            # inputs.shape[0] - t + 1 in PyTorch

    x_t = x_ref[0]                          # (B, F) -- same input every step
    h0 = h0_ref[0]                          # rolling hidden at t
    c0 = c0_ref[0]                          # rolling cell at t

    # Input contribution to each gate is constant across unrolled steps.
    gx = tuple(
        jnp.dot(x_t, wx_ref[k], preferred_element_type=jnp.float32) + b_ref[k]
        for k in range(4))

    def body(s, carry):
        h, c = carry

        def gate(k):
            return gx[k] + jnp.dot(h, wh_ref[k],
                                   preferred_element_type=jnp.float32)

        i = _sigmoid(gate(0))
        f = _sigmoid(gate(1))
        g = jnp.tanh(gate(2))
        o = _sigmoid(gate(3))
        c_new = f * c + i * g
        h_new = o * jnp.tanh(c_new)
        active = s < n_steps                # static max trip-count, masked tail
        return (jnp.where(active, h_new, h), jnp.where(active, c_new, c))

    h, _ = lax.fori_loop(0, T_total + 1, body, (h0, c0), unroll=True)

    # classifier = Dropout (identity in eval) + Linear(hidden, num_class)
    y_ref[0] = (jnp.dot(h, wcls_ref[...], preferred_element_type=jnp.float32)
                + bcls_ref[...])
    pred_ref[0] = h


# --------------------------------- wrapper -----------------------------------
def rulstm_forward(inputs_btf, params, *, return_context=True):
    """inputs_btf: (B, T, F). Returns y (B, T, C) [, context (B, T, 2H)]."""
    wx_r, wh_r, b_r = params["rolling"]
    wx_u, wh_u, b_u = params["unrolling"]
    w_cls, b_cls = params["classifier"]

    B, T, F = inputs_btf.shape
    H = wh_r.shape[-1]
    C = w_cls.shape[-1]

    x_tbf = jnp.transpose(inputs_btf, (1, 0, 2))          # inputs.permute(1,0,2)

    def full_block(shape):
        return pl.BlockSpec(shape, lambda t, _n=len(shape): (0,) * _n)

    cp_seq = pltpu.CompilerParams(
        dimension_semantics=("arbitrary",),                # sequential recurrence
        vmem_limit_bytes=48 << 20)                         # < v7x 64 MiB physical
    cp_par = pltpu.CompilerParams(
        dimension_semantics=("parallel",),                 # independent t steps
        vmem_limit_bytes=48 << 20)

    roll_h, roll_c = pl.pallas_call(
        rolling_lstm_kernel,
        grid=(T,),
        in_specs=[
            pl.BlockSpec((1, B, F), lambda t: (t, 0, 0)),
            full_block(wx_r.shape), full_block(wh_r.shape), full_block(b_r.shape),
        ],
        out_specs=(
            pl.BlockSpec((1, B, H), lambda t: (t, 0, 0)),
            pl.BlockSpec((1, B, H), lambda t: (t, 0, 0)),
        ),
        out_shape=(jax.ShapeDtypeStruct((T, B, H), jnp.float32),
                   jax.ShapeDtypeStruct((T, B, H), jnp.float32)),
        scratch_shapes=[pltpu.VMEM((B, H), jnp.float32),
                        pltpu.VMEM((B, H), jnp.float32)],
        compiler_params=cp_seq,
    )(x_tbf, wx_r, wh_r, b_r)

    y_tbc, pred_tbh = pl.pallas_call(
        functools.partial(unrolling_kernel, T),
        grid=(T,),
        in_specs=[
            pl.BlockSpec((1, B, F), lambda t: (t, 0, 0)),
            pl.BlockSpec((1, B, H), lambda t: (t, 0, 0)),
            pl.BlockSpec((1, B, H), lambda t: (t, 0, 0)),
            full_block(wx_u.shape), full_block(wh_u.shape), full_block(b_u.shape),
            full_block(w_cls.shape), full_block(b_cls.shape),
        ],
        out_specs=(
            pl.BlockSpec((1, B, C), lambda t: (t, 0, 0)),
            pl.BlockSpec((1, B, H), lambda t: (t, 0, 0)),
        ),
        out_shape=(jax.ShapeDtypeStruct((T, B, C), jnp.float32),
                   jax.ShapeDtypeStruct((T, B, H), jnp.float32)),
        compiler_params=cp_par,
    )(x_tbf, roll_h, roll_c, wx_u, wh_u, b_u, w_cls, b_cls)

    y = jnp.transpose(y_tbc, (1, 0, 2))                    # (B, T, C)
    if return_context:
        pred = jnp.transpose(pred_tbh, (1, 0, 2))          # (B, T, H)
        cell = jnp.transpose(roll_c, (1, 0, 2))            # c.squeeze().permute(1,0,2)
        return y, jnp.concatenate([pred, cell], axis=2)    # torch.cat([x, c], 2)
    return y


# ---------------------------- pure-JAX reference -----------------------------
def reference_forward(inputs_btf, params, *, return_context=True):
    wx_r, wh_r, b_r = params["rolling"]
    wx_u, wh_u, b_u = params["unrolling"]
    w_cls, b_cls = params["classifier"]
    B, T, F = inputs_btf.shape
    H = wh_r.shape[-1]
    x = jnp.transpose(inputs_btf, (1, 0, 2))

    def cell_step(x_t, h, c, wx, wh, b):
        def gate(k):
            return x_t @ wx[k] + h @ wh[k] + b[k]
        i = jax.nn.sigmoid(gate(0)); f = jax.nn.sigmoid(gate(1))
        g = jnp.tanh(gate(2)); o = jax.nn.sigmoid(gate(3))
        c_new = f * c + i * g
        return o * jnp.tanh(c_new), c_new

    h = jnp.zeros((B, H), jnp.float32)
    c = jnp.zeros((B, H), jnp.float32)
    roll_h, roll_c = [], []
    for t in range(T):
        h, c = cell_step(x[t], h, c, wx_r, wh_r, b_r)
        roll_h.append(h); roll_c.append(c)

    preds = []
    for t in range(T):
        h, c = roll_h[t], roll_c[t]
        for _ in range(T - t + 1):
            h, c = cell_step(x[t], h, c, wx_u, wh_u, b_u)
        preds.append(h)

    pred = jnp.stack(preds, axis=1)                        # (B, T, H)
    y = pred @ w_cls + b_cls
    if return_context:
        cell = jnp.stack(roll_c, axis=1)                   # (B, T, H)
        return y, jnp.concatenate([pred, cell], axis=2)
    return y


# ----------------------------------- main -------------------------------------
if __name__ == "__main__":
    B, T, F, H, C = 2, 8, 32, 32, 16

    key = jax.random.PRNGKey(0)
    ks = iter(jax.random.split(key, 8))

    inputs = jax.random.normal(next(ks), (B, T, F), jnp.float32)

    def lstm_params(k, fin, h):
        k1, k2, k3 = jax.random.split(k, 3)
        s = 1.0 / float(h) ** 0.5
        wx = s * jax.random.normal(k1, (4, fin, h), jnp.float32)
        wh = s * jax.random.normal(k2, (4, h, h), jnp.float32)
        b = s * jax.random.normal(k3, (4, 1, h), jnp.float32)
        return wx, wh, b

    params = {
        "rolling": lstm_params(next(ks), F, H),
        "unrolling": lstm_params(next(ks), F, H),
        "classifier": (0.1 * jax.random.normal(next(ks), (H, C), jnp.float32),
                       0.1 * jax.random.normal(next(ks), (1, C), jnp.float32)),
    }

    y, ctx = rulstm_forward(inputs, params, return_context=True)
    jax.block_until_ready((y, ctx))

    y_ref, ctx_ref = reference_forward(inputs, params, return_context=True)
    assert y.shape == (B, T, C) and ctx.shape == (B, T, 2 * H)
    assert jnp.allclose(y, y_ref, atol=1e-3, rtol=1e-3), \
        float(jnp.max(jnp.abs(y - y_ref)))
    assert jnp.allclose(ctx, ctx_ref, atol=1e-3, rtol=1e-3), \
        float(jnp.max(jnp.abs(ctx - ctx_ref)))
    print("KERNEL_OK")
</pallas_src>

<mosaic_0001>
module attributes {stable_mosaic.version = 11 : i64} {
  func.func @rolling_lstm_kernel(%arg0: i32, %arg1: memref<1x2x32xf32, #tpu.memory_space<vmem>>, %arg2: memref<4x32x32xf32, #tpu.memory_space<vmem>>, %arg3: memref<4x32x32xf32, #tpu.memory_space<vmem>>, %arg4: memref<4x1x32xf32, #tpu.memory_space<vmem>>, %arg5: memref<1x2x32xf32, #tpu.memory_space<vmem>>, %arg6: memref<1x2x32xf32, #tpu.memory_space<vmem>>, %arg7: memref<2x32xf32, #tpu.memory_space<vmem>>, %arg8: memref<2x32xf32, #tpu.memory_space<vmem>>) attributes {dimension_semantics = [#tpu.dimension_semantics<arbitrary>], iteration_bounds = array<i64: 8>, scalar_prefetch = 0 : i64, scratch_operands = 2 : i64, tpu.core_type = #tpu.core_type<tc>, window_params = [{transform_indices = @transform_0, window_bounds = array<i64: 1, 2, 32>}, {pipeline_mode = #tpu.pipeline_mode<synchronous>, transform_indices = @transform_1, window_bounds = array<i64: 4, 32, 32>}, {pipeline_mode = #tpu.pipeline_mode<synchronous>, transform_indices = @transform_2, window_bounds = array<i64: 4, 32, 32>}, {pipeline_mode = #tpu.pipeline_mode<synchronous>, transform_indices = @transform_3, window_bounds = array<i64: 4, 1, 32>}, {transform_indices = @transform_4, window_bounds = array<i64: 1, 2, 32>}, {transform_indices = @transform_5, window_bounds = array<i64: 1, 2, 32>}]} {
    %c0_i32 = arith.constant 0 : i32
    %0 = arith.cmpi eq, %arg0, %c0_i32 : i32
    %1 = arith.extui %0 : i1 to i32
    %c0_i32_0 = arith.constant 0 : i32
    %2 = arith.cmpi ne, %1, %c0_i32_0 : i32
    scf.if %2 {
      %cst_66 = arith.constant 0.000000e+00 : f32
      %86 = vector.broadcast %cst_66 : f32 to vector<2x32xf32>
      %c0_67 = arith.constant 0 : index
      %c0_68 = arith.constant 0 : index
      %87 = vector.load %arg7[%c0_67, %c0_68] : memref<2x32xf32, #tpu.memory_space<vmem>>, vector<2x32xf32>
      tpu.vector_store %arg7[%c0_67, %c0_68], %86 {strides = array<i32>} : memref<2x32xf32, #tpu.memory_space<vmem>>, vector<2x32xf32>,
      %cst_69 = arith.constant 0.000000e+00 : f32
      %88 = vector.broadcast %cst_69 : f32 to vector<2x32xf32>
      %c0_70 = arith.constant 0 : index
      %c0_71 = arith.constant 0 : index
      %89 = vector.load %arg8[%c0_70, %c0_71] : memref<2x32xf32, #tpu.memory_space<vmem>>, vector<2x32xf32>
      tpu.vector_store %arg8[%c0_70, %c0_71], %88 {strides = array<i32>} : memref<2x32xf32, #tpu.memory_space<vmem>>, vector<2x32xf32>,
    } else {
    }
    %c0 = arith.constant 0 : index
    %c0_1 = arith.constant 0 : index
    %c0_2 = arith.constant 0 : index
    %3 = vector.load %arg1[%c0, %c0_1, %c0_2] : memref<1x2x32xf32, #tpu.memory_space<vmem>>, vector<1x2x32xf32>
    %4 = vector.shape_cast %3 : vector<1x2x32xf32> to vector<2x32xf32>
    %c0_3 = arith.constant 0 : index
    %c0_4 = arith.constant 0 : index
    %5 = vector.load %arg7[%c0_3, %c0_4] : memref<2x32xf32, #tpu.memory_space<vmem>>, vector<2x32xf32>
    %c0_5 = arith.constant 0 : index
    %c0_6 = arith.constant 0 : index
    %6 = vector.load %arg8[%c0_5, %c0_6] : memref<2x32xf32, #tpu.memory_space<vmem>>, vector<2x32xf32>
    %c0_7 = arith.constant 0 : index
    %c0_8 = arith.constant 0 : index
    %c0_9 = arith.constant 0 : index
    %7 = vector.load %arg2[%c0_7, %c0_8, %c0_9] : memref<4x32x32xf32, #tpu.memory_space<vmem>>, vector<1x32x32xf32>
    %8 = vector.shape_cast %7 : vector<1x32x32xf32> to vector<32x32xf32>
    %cst = arith.constant dense<0.000000e+00> : vector<2x32xf32>
    %9 = tpu.matmul %4, %8, %cst {dimension_numbers = #tpu.dot_dimension_numbers<[1], [0], [0], [1], [0, 0, 1, 1], [], []>} : vector<2x32xf32>, vector<32x32xf32>, vector<2x32xf32> -> vector<2x32xf32>
    %c0_10 = arith.constant 0 : index
    %c0_11 = arith.constant 0 : index
    %c0_12 = arith.constant 0 : index
    %10 = vector.load %arg3[%c0_10, %c0_11, %c0_12] : memref<4x32x32xf32, #tpu.memory_space<vmem>>, vector<1x32x32xf32>
    %11 = vector.shape_cast %10 : vector<1x32x32xf32> to vector<32x32xf32>
    %cst_13 = arith.constant dense<0.000000e+00> : vector<2x32xf32>
    %12 = tpu.matmul %5, %11, %cst_13 {dimension_numbers = #tpu.dot_dimension_numbers<[1], [0], [0], [1], [0, 0, 1, 1], [], []>} : vector<2x32xf32>, vector<32x32xf32>, vector<2x32xf32> -> vector<2x32xf32>
    %13 = arith.addf %9, %12 : vector<2x32xf32>
    %c0_14 = arith.constant 0 : index
    %c0_15 = arith.constant 0 : index
    %c0_16 = arith.constant 0 : index
    %14 = vector.load %arg4[%c0_14, %c0_15, %c0_16] : memref<4x1x32xf32, #tpu.memory_space<vmem>>, vector<1x1x32xf32>
    %15 = vector.shape_cast %14 : vector<1x1x32xf32> to vector<1x32xf32>
    %16 = vector.broadcast %15 : vector<1x32xf32> to vector<2x32xf32>
    %17 = arith.addf %13, %16 : vector<2x32xf32>
    %cst_17 = arith.constant 0.000000e+00 : f32
    %18 = vector.broadcast %cst_17 : f32 to vector<2x32xf32>
    %19 = arith.subf %18, %17 : vector<2x32xf32>
    %20 = math.exp %19 : vector<2x32xf32>
    %cst_18 = arith.constant 1.000000e+00 : f32
    %21 = vector.broadcast %cst_18 : f32 to vector<2x32xf32>
    %22 = arith.addf %21, %20 : vector<2x32xf32>
    %cst_19 = arith.constant 1.000000e+00 : f32
    %23 = vector.broadcast %cst_19 : f32 to vector<2x32xf32>
    %24 = arith.divf %23, %22 : vector<2x32xf32>
    %c1 = arith.constant 1 : index
    %c0_20 = arith.constant 0 : index
    %c0_21 = arith.constant 0 : index
    %25 = vector.load %arg2[%c1, %c0_20, %c0_21] : memref<4x32x32xf32, #tpu.memory_space<vmem>>, vector<1x32x32xf32>
    %26 = vector.shape_cast %25 : vector<1x32x32xf32> to vector<32x32xf32>
    %cst_22 = arith.constant dense<0.000000e+00> : vector<2x32xf32>
    %27 = tpu.matmul %4, %26, %cst_22 {dimension_numbers = #tpu.dot_dimension_numbers<[1], [0], [0], [1], [0, 0, 1, 1], [], []>} : vector<2x32xf32>, vector<32x32xf32>, vector<2x32xf32> -> vector<2x32xf32>
    %c1_23 = arith.constant 1 : index
    %c0_24 = arith.constant 0 : index
    %c0_25 = arith.constant 0 : index
    %28 = vector.load %arg3[%c1_23, %c0_24, %c0_25] : memref<4x32x32xf32, #tpu.memory_space<vmem>>, vector<1x32x32xf32>
    %29 = vector.shape_cast %28 : vector<1x32x32xf32> to vector<32x32xf32>
    %cst_26 = arith.constant dense<0.000000e+00> : vector<2x32xf32>
    %30 = tpu.matmul %5, %29, %cst_26 {dimension_numbers = #tpu.dot_dimension_numbers<[1], [0], [0], [1], [0, 0, 1, 1], [], []>} : vector<2x32xf32>, vector<32x32xf32>, vector<2x32xf32> -> vector<2x32xf32>
    %31 = arith.addf %27, %30 : vector<2x32xf32>
    %c1_27 = arith.constant 1 : index
    %c0_28 = arith.constant 0 : index
    %c0_29 = arith.constant 0 : index
    %32 = vector.load %arg4[%c1_27, %c0_28, %c0_29] : memref<4x1x32xf32, #tpu.memory_space<vmem>>, vector<1x1x32xf32>
    %33 = vector.shape_cast %32 : vector<1x1x32xf32> to vector<1x32xf32>
    %34 = vector.broadcast %33 : vector<1x32xf32> to vector<2x32xf32>
    %35 = arith.addf %31, %34 : vector<2x32xf32>
    %cst_30 = arith.constant 0.000000e+00 : f32
    %36 = vector.broadcast %cst_30 : f32 to vector<2x32xf32>
    %37 = arith.subf %36, %35 : vector<2x32xf32>
    %38 = math.exp %37 : vector<2x32xf32>
    %cst_31 = arith.constant 1.000000e+00 : f32
    %39 = vector.broadcast %cst_31 : f32 to vector<2x32xf32>
    %40 = arith.addf %39, %38 : vector<2x32xf32>
    %cst_32 = arith.constant 1.000000e+00 : f32
    %41 = vector.broadcast %cst_32 : f32 to vector<2x32xf32>
    %42 = arith.divf %41, %40 : vector<2x32xf32>
    %c2 = arith.constant 2 : index
    %c0_33 = arith.constant 0 : index
    %c0_34 = arith.constant 0 : index
    %43 = vector.load %arg2[%c2, %c0_33, %c0_34] : memref<4x32x32xf32, #tpu.memory_space<vmem>>, vector<1x32x32xf32>
    %44 = vector.shape_cast %43 : vector<1x32x32xf32> to vector<32x32xf32>
    %cst_35 = arith.constant dense<0.000000e+00> : vector<2x32xf32>
    %45 = tpu.matmul %4, %44, %cst_35 {dimension_numbers = #tpu.dot_dimension_numbers<[1], [0], [0], [1], [0, 0, 1, 1], [], []>} : vector<2x32xf32>, vector<32x32xf32>, vector<2x32xf32> -> vector<2x32xf32>
    %c2_36 = arith.constant 2 : index
    %c0_37 = arith.constant 0 : index
    %c0_38 = arith.constant 0 : index
    %46 = vector.load %arg3[%c2_36, %c0_37, %c0_38] : memref<4x32x32xf32, #tpu.memory_space<vmem>>, vector<1x32x32xf32>
    %47 = vector.shape_cast %46 : vector<1x32x32xf32> to vector<32x32xf32>
    %cst_39 = arith.constant dense<0.000000e+00> : vector<2x32xf32>
    %48 = tpu.matmul %5, %47, %cst_39 {dimension_numbers = #tpu.dot_dimension_numbers<[1], [0], [0], [1], [0, 0, 1, 1], [], []>} : vector<2x32xf32>, vector<32x32xf32>, vector<2x32xf32> -> vector<2x32xf32>
    %49 = arith.addf %45, %48 : vector<2x32xf32>
    %c2_40 = arith.constant 2 : index
    %c0_41 = arith.constant 0 : index
    %c0_42 = arith.constant 0 : index
    %50 = vector.load %arg4[%c2_40, %c0_41, %c0_42] : memref<4x1x32xf32, #tpu.memory_space<vmem>>, vector<1x1x32xf32>
    %51 = vector.shape_cast %50 : vector<1x1x32xf32> to vector<1x32xf32>
    %52 = vector.broadcast %51 : vector<1x32xf32> to vector<2x32xf32>
    %53 = arith.addf %49, %52 : vector<2x32xf32>
    %54 = math.tanh %53 : vector<2x32xf32>
    %c3 = arith.constant 3 : index
    %c0_43 = arith.constant 0 : index
    %c0_44 = arith.constant 0 : index
    %55 = vector.load %arg2[%c3, %c0_43, %c0_44] : memref<4x32x32xf32, #tpu.memory_space<vmem>>, vector<1x32x32xf32>
    %56 = vector.shape_cast %55 : vector<1x32x32xf32> to vector<32x32xf32>
    %cst_45 = arith.constant dense<0.000000e+00> : vector<2x32xf32>
    %57 = tpu.matmul %4, %56, %cst_45 {dimension_numbers = #tpu.dot_dimension_numbers<[1], [0], [0], [1], [0, 0, 1, 1], [], []>} : vector<2x32xf32>, vector<32x32xf32>, vector<2x32xf32> -> vector<2x32xf32>
    %c3_46 = arith.constant 3 : index
    %c0_47 = arith.constant 0 : index
    %c0_48 = arith.constant 0 : index
    %58 = vector.load %arg3[%c3_46, %c0_47, %c0_48] : memref<4x32x32xf32, #tpu.memory_space<vmem>>, vector<1x32x32xf32>
    %59 = vector.shape_cast %58 : vector<1x32x32xf32> to vector<32x32xf32>
    %cst_49 = arith.constant dense<0.000000e+00> : vector<2x32xf32>
    %60 = tpu.matmul %5, %59, %cst_49 {dimension_numbers = #tpu.dot_dimension_numbers<[1], [0], [0], [1], [0, 0, 1, 1], [], []>} : vector<2x32xf32>, vector<32x32xf32>, vector<2x32xf32> -> vector<2x32xf32>
    %61 = arith.addf %57, %60 : vector<2x32xf32>
    %c3_50 = arith.constant 3 : index
    %c0_51 = arith.constant 0 : index
    %c0_52 = arith.constant 0 : index
    %62 = vector.load %arg4[%c3_50, %c0_51, %c0_52] : memref<4x1x32xf32, #tpu.memory_space<vmem>>, vector<1x1x32xf32>
    %63 = vector.shape_cast %62 : vector<1x1x32xf32> to vector<1x32xf32>
    %64 = vector.broadcast %63 : vector<1x32xf32> to vector<2x32xf32>
    %65 = arith.addf %61, %64 : vector<2x32xf32>
    %cst_53 = arith.constant 0.000000e+00 : f32
    %66 = vector.broadcast %cst_53 : f32 to vector<2x32xf32>
    %67 = arith.subf %66, %65 : vector<2x32xf32>
    %68 = math.exp %67 : vector<2x32xf32>
    %cst_54 = arith.constant 1.000000e+00 : f32
    %69 = vector.broadcast %cst_54 : f32 to vector<2x32xf32>
    %70 = arith.addf %69, %68 : vector<2x32xf32>
    %cst_55 = arith.constant 1.000000e+00 : f32
    %71 = vector.broadcast %cst_55 : f32 to vector<2x32xf32>
    %72 = arith.divf %71, %70 : vector<2x32xf32>
    %73 = arith.mulf %42, %6 : vector<2x32xf32>
    %74 = arith.mulf %24, %54 : vector<2x32xf32>
    %75 = arith.addf %73, %74 : vector<2x32xf32>
    %76 = math.tanh %75 : vector<2x32xf32>
    %77 = arith.mulf %72, %76 : vector<2x32xf32>
    %c0_56 = arith.constant 0 : index
    %c0_57 = arith.constant 0 : index
    %78 = vector.load %arg7[%c0_56, %c0_57] : memref<2x32xf32, #tpu.memory_space<vmem>>, vector<2x32xf32>
    tpu.vector_store %arg7[%c0_56, %c0_57], %77 {strides = array<i32>} : memref<2x32xf32, #tpu.memory_space<vmem>>, vector<2x32xf32>,
    %c0_58 = arith.constant 0 : index
    %c0_59 = arith.constant 0 : index
    %79 = vector.load %arg8[%c0_58, %c0_59] : memref<2x32xf32, #tpu.memory_space<vmem>>, vector<2x32xf32>
    tpu.vector_store %arg8[%c0_58, %c0_59], %75 {strides = array<i32>} : memref<2x32xf32, #tpu.memory_space<vmem>>, vector<2x32xf32>,
    %c0_60 = arith.constant 0 : index
    %c0_61 = arith.constant 0 : index
    %c0_62 = arith.constant 0 : index
    %80 = vector.load %arg5[%c0_60, %c0_61, %c0_62] : memref<1x2x32xf32, #tpu.memory_space<vmem>>, vector<1x2x32xf32>
    %81 = vector.shape_cast %80 : vector<1x2x32xf32> to vector<2x32xf32>
    %82 = vector.shape_cast %77 : vector<2x32xf32> to vector<1x2x32xf32>
    tpu.vector_store %arg5[%c0_60, %c0_61, %c0_62], %82 {strides = array<i32>} : memref<1x2x32xf32, #tpu.memory_space<vmem>>, vector<1x2x32xf32>,
    %c0_63 = arith.constant 0 : index
    %c0_64 = arith.constant 0 : index
    %c0_65 = arith.constant 0 : index
    %83 = vector.load %arg6[%c0_63, %c0_64, %c0_65] : memref<1x2x32xf32, #tpu.memory_space<vmem>>, vector<1x2x32xf32>
    %84 = vector.shape_cast %83 : vector<1x2x32xf32> to vector<2x32xf32>
    %85 = vector.shape_cast %75 : vector<2x32xf32> to vector<1x2x32xf32>
    tpu.vector_store %arg6[%c0_63, %c0_64, %c0_65], %85 {strides = array<i32>} : memref<1x2x32xf32, #tpu.memory_space<vmem>>, vector<1x2x32xf32>,
    return
  }
  func.func @transform_0(%arg0: i32) -> (i32, i32, i32) {
    %c0_i32 = arith.constant 0 : i32
    %c0_i32_0 = arith.constant 0 : i32
    %c0_i32_1 = arith.constant 0 : i32
    return %arg0, %c0_i32, %c0_i32_0 : i32, i32, i32
  }
  func.func @transform_1(%arg0: i32) -> (i32, i32, i32) {
    %c0_i32 = arith.constant 0 : i32
    %c0_i32_0 = arith.constant 0 : i32
    %c0_i32_1 = arith.constant 0 : i32
    %c0_i32_2 = arith.constant 0 : i32
    return %c0_i32, %c0_i32_0, %c0_i32_1 : i32, i32, i32
  }
  func.func @transform_2(%arg0: i32) -> (i32, i32, i32) {
    %c0_i32 = arith.constant 0 : i32
    %c0_i32_0 = arith.constant 0 : i32
    %c0_i32_1 = arith.constant 0 : i32
    %c0_i32_2 = arith.constant 0 : i32
    return %c0_i32, %c0_i32_0, %c0_i32_1 : i32, i32, i32
  }
  func.func @transform_3(%arg0: i32) -> (i32, i32, i32) {
    %c0_i32 = arith.constant 0 : i32
    %c0_i32_0 = arith.constant 0 : i32
    %c0_i32_1 = arith.constant 0 : i32
    %c0_i32_2 = arith.constant 0 : i32
    return %c0_i32, %c0_i32_0, %c0_i32_1 : i32, i32, i32
  }
  func.func @transform_4(%arg0: i32) -> (i32, i32, i32) {
    %c0_i32 = arith.constant 0 : i32
    %c0_i32_0 = arith.constant 0 : i32
    %c0_i32_1 = arith.constant 0 : i32
    return %arg0, %c0_i32, %c0_i32_0 : i32, i32, i32
  }
  func.func @transform_5(%arg0: i32) -> (i32, i32, i32) {
    %c0_i32 = arith.constant 0 : i32
    %c0_i32_0 = arith.constant 0 : i32
    %c0_i32_1 = arith.constant 0 : i32
    return %arg0, %c0_i32, %c0_i32_0 : i32, i32, i32
  }
}

</mosaic_0001>

<llo_original>
// kernel: tpu_custom_call.1
$region0: #{tpu_custom_call.1}
  #allocation0 [shape = 'u32[]', space=smem, size = 0x4, offset = 0x4, fixed_abs, tag = 'smem constant byte address 0x4 - core index']
  #allocation1 [shape = 'u32[144,128]{1,0:T(1,128)}', space=vmem, size = 0x12000, scoped, tag = 'internal scratch']
  #allocation2 [shape = 'f32[2,32]{1,0:T(2,128)}', space=vmem, size = 0x400, scoped, tag = 'scratch operand']
  #allocation3 [shape = 'f32[2,32]{1,0:T(2,128)}', space=vmem, size = 0x400, scoped, tag = 'scratch operand']
  %s0 = inlined_call_operand.hbm [shape: f32[8,2,32], index: 0, kind: input, shape index: {}]
  %s1 = inlined_call_operand.hbm [shape: f32[4,32,32], index: 1, kind: input, shape index: {}]
  %s2 = inlined_call_operand.hbm [shape: f32[4,32,32], index: 2, kind: input, shape index: {}]
  %s3 = inlined_call_operand.vmem [shape: f32[4,1,32], index: 3, kind: input, shape index: {}]
  %s4 = inlined_call_operand.hbm [shape: f32[8,2,32], index: 4, kind: output, shape index: {0}]
  %s5 = inlined_call_operand.hbm [shape: f32[8,2,32], index: 5, kind: output, shape index: {1}]
  %6 = xla_tuple %s4, %s5
  %s7 = sld [smem:[#allocation0]]
  $region73: #{tpu_custom_call.1} parent=0
    _
  %s9 = ssub.s32 1, %s7
  %s10 = scalar_select 0, %s9, %s7
  $region1: #{tpu_custom_call.1} parent=0
    #allocation4 [shape = 'u8[2048]{0}', space=vmem, size = 0x800, scoped, tag = 'input window, operand 0']
    #allocation5 [shape = 's32[2]{0}', space=sflag, size = 0x8, scoped, tag = 'scoped memory for tpu_custom_call.1']
    #allocation6 [shape = 's32[2]{0}', space=sflag, size = 0x8, scoped, tag = 'scoped memory for tpu_custom_call.1']
    #allocation7 [shape = 'u8[65536]{0}', space=vmem, size = 0x10000, scoped, tag = 'input window, operand 1, single buffered']
    #allocation8 [shape = 's32[1]{0}', space=sflag, size = 0x4, scoped, tag = 'scoped memory for tpu_custom_call.1']
    #allocation9 [shape = 'u8[65536]{0}', space=vmem, size = 0x10000, scoped, tag = 'input window, operand 2, single buffered']
    #allocation10 [shape = 'u8[2048]{0}', space=vmem, size = 0x800, scoped, tag = 'output window, operand 0']
    #allocation11 [shape = 'u8[2048]{0}', space=vmem, size = 0x800, scoped, tag = 'output window, operand 1']
    #allocation12 [shape = 's32[2]{0}', space=sflag, size = 0x8, scoped, tag = 'scoped memory for tpu_custom_call.1']
    %11 = vsyncpa [#allocation5], 0
    %s12 = scalar_lea.sflag [#allocation5], 1
    %13 = vsyncpa %s12, 0
    %14 = vsyncpa [#allocation8], 0
    %15 = vsyncpa [#allocation6], 0
    %s16 = scalar_lea.sflag [#allocation6], 1
    %17 = vsyncpa %s16, 0
    %18 = vsyncpa [#allocation12], 0
    %s19 = scalar_lea.sflag [#allocation12], 1
    %20 = vsyncpa %s19, 0
    loop: start=0, step=1, limit=10
    $region2: #{tpu_custom_call.1} parent=1 // loop_pre_header
      _
    $region3: #{tpu_custom_call.1} parent=1 // loop_header
      %s22 = sphi 0, %s26
      %p23 = scmp.ge.s32.totalorder %s22, 10
      %s32 = sphi 0, %s34
      %s35 = sphi 0, %s32
      %s36 = sphi 0, %s35
      %s52 = sphi 0, %s36
      %s56 = sphi 0, %s56
      %s58 = sphi 0, %s56
      %s59 = sphi 0, %s58
      %s73 = sphi 0, %s59
      %s77 = sphi 0, %s77
      %s79 = sphi 0, %s77
      %s80 = sphi 0, %s79
      %s94 = sphi 0, %s80
      %s98 = sphi 0, %s98
      %s100 = sphi 0, %s98
      %s101 = sphi 0, %s100
      %s115 = sphi 0, %s101
      %s121 = sphi 0, %s123
      %s124 = sphi 0, %s121
      %s125 = sphi 0, %s124
      %s141 = sphi 0, %s125
      %s147 = sphi 0, %s149
      %s150 = sphi 0, %s147
      %s151 = sphi 0, %s150
      %s167 = sphi 0, %s151
    $region4: #{tpu_custom_call.1} parent=1 // loop_header_branch
      %25 = sbr.rel (%p23) target = $region8
    $region5: #{tpu_custom_call.1} parent=1 // loop_body
      %s27 = ssub.s32 %s22, 1
      %s28 = ssub.s32 %s22, 2
      %s29 = sadd.s32 %s22, 1
      %s30 = ssub.s32 %s22, %s29
      %p31 = scmp.eq.s32.totalorder %s30, 0
      %s33 = sadd.s32 %s32, 1
      %s34 = scalar_select %p31, %s32, %s33
      %p37 = pneg %p31
      %p38 = scmp.eq.s32.totalorder %s22, 7
      %p39 = por %p37, %p38
      %p40 = scmp.ne.s32.totalorder %s32, %s35
      %p41 = scmp.eq.s32.totalorder %s22, 0
      %p42 = por %p40, %p41
      %p43 = scmp.ne.s32.totalorder %s32, %s35
      %p44 = scmp.eq.s32.totalorder %s27, 7
      %p45 = por %p43, %p44
      %p46 = scmp.ne.s32.totalorder %s35, %s36
      %p47 = scmp.eq.s32.totalorder %s27, 0
      %p48 = por %p46, %p47
      %p49 = scmp.ne.s32.totalorder %s35, %s36
      %p50 = scmp.eq.s32.totalorder %s28, 7
      %p51 = por %p49, %p50
      %p53 = scmp.ne.s32.totalorder %s36, %s52
      %p54 = scmp.eq.s32.totalorder %s28, 0
      %p55 = por %p53, %p54
      %s57 = sadd.s32 %s56, 1
      %p60 = scmp.eq.s32.totalorder %s22, 7
      %p61 = scmp.ne.s32.totalorder %s56, %s58
      %p62 = scmp.eq.s32.totalorder %s22, 0
      %p63 = por %p61, %p62
      %p64 = scmp.ne.s32.totalorder %s56, %s58
      %p65 = scmp.eq.s32.totalorder %s27, 7
      %p66 = por %p64, %p65
      %p67 = scmp.ne.s32.totalorder %s58, %s59
      %p68 = scmp.eq.s32.totalorder %s27, 0
      %p69 = por %p67, %p68
      %p70 = scmp.ne.s32.totalorder %s58, %s59
      %p71 = scmp.eq.s32.totalorder %s28, 7
      %p72 = por %p70, %p71
      %p74 = scmp.ne.s32.totalorder %s59, %s73
      %p75 = scmp.eq.s32.totalorder %s28, 0
      %p76 = por %p74, %p75
      %s78 = sadd.s32 %s77, 1
      %p81 = scmp.eq.s32.totalorder %s22, 7
      %p82 = scmp.ne.s32.totalorder %s77, %s79
      %p83 = scmp.eq.s32.totalorder %s22, 0
      %p84 = por %p82, %p83
      %p85 = scmp.ne.s32.totalorder %s77, %s79
      %p86 = scmp.eq.s32.totalorder %s27, 7
      %p87 = por %p85, %p86
      %p88 = scmp.ne.s32.totalorder %s79, %s80
      %p89 = scmp.eq.s32.totalorder %s27, 0
      %p90 = por %p88, %p89
      %p91 = scmp.ne.s32.totalorder %s79, %s80
      %p92 = scmp.eq.s32.totalorder %s28, 7
      %p93 = por %p91, %p92
      %p95 = scmp.ne.s32.totalorder %s80, %s94
      %p96 = scmp.eq.s32.totalorder %s28, 0
      %p97 = por %p95, %p96
      %s99 = sadd.s32 %s98, 1
      %p102 = scmp.eq.s32.totalorder %s22, 7
      %p103 = scmp.ne.s32.totalorder %s98, %s100
      %p104 = scmp.eq.s32.totalorder %s22, 0
      %p105 = por %p103, %p104
      %p106 = scmp.ne.s32.totalorder %s98, %s100
      %p107 = scmp.eq.s32.totalorder %s27, 7
      %p108 = por %p106, %p107
      %p109 = scmp.ne.s32.totalorder %s100, %s101
      %p110 = scmp.eq.s32.totalorder %s27, 0
      %p111 = por %p109, %p110
      %p112 = scmp.ne.s32.totalorder %s100, %s101
      %p113 = scmp.eq.s32.totalorder %s28, 7
      %p114 = por %p112, %p113
      %p116 = scmp.ne.s32.totalorder %s101, %s115
      %p117 = scmp.eq.s32.totalorder %s28, 0
      %p118 = por %p116, %p117
      %s119 = ssub.s32 %s22, %s29
      %p120 = scmp.eq.s32.totalorder %s119, 0
      %s122 = sadd.s32 %s121, 1
      %s123 = scalar_select %p120, %s121, %s122
      %p126 = pneg %p120
      %p127 = scmp.eq.s32.totalorder %s22, 7
      %p128 = por %p126, %p127
      %p129 = scmp.ne.s32.totalorder %s121, %s124
      %p130 = scmp.eq.s32.totalorder %s22, 0
      %p131 = por %p129, %p130
      %p132 = scmp.ne.s32.totalorder %s121, %s124
      %p133 = scmp.eq.s32.totalorder %s27, 7
      %p134 = por %p132, %p133
      %p135 = scmp.ne.s32.totalorder %s124, %s125
      %p136 = scmp.eq.s32.totalorder %s27, 0
      %p137 = por %p135, %p136
      %p138 = scmp.ne.s32.totalorder %s124, %s125
      %p139 = scmp.eq.s32.totalorder %s28, 7
      %p140 = por %p138, %p139
      %p142 = scmp.ne.s32.totalorder %s125, %s141
      %p143 = scmp.eq.s32.totalorder %s28, 0
      %p144 = por %p142, %p143
      %s145 = ssub.s32 %s22, %s29
      %p146 = scmp.eq.s32.totalorder %s145, 0
      %s148 = sadd.s32 %s147, 1
      %s149 = scalar_select %p146, %s147, %s148
      %p152 = pneg %p146
      %p153 = scmp.eq.s32.totalorder %s22, 7
      %p154 = por %p152, %p153
      %p155 = scmp.ne.s32.totalorder %s147, %s150
      %p156 = scmp.eq.s32.totalorder %s22, 0
      %p157 = por %p155, %p156
      %p158 = scmp.ne.s32.totalorder %s147, %s150
      %p159 = scmp.eq.s32.totalorder %s27, 7
      %p160 = por %p158, %p159
      %p161 = scmp.ne.s32.totalorder %s150, %s151
      %p162 = scmp.eq.s32.totalorder %s27, 0
      %p163 = por %p161, %p162
      %p164 = scmp.ne.s32.totalorder %s150, %s151
      %p165 = scmp.eq.s32.totalorder %s28, 7
      %p166 = por %p164, %p165
      %p168 = scmp.ne.s32.totalorder %s151, %s167
      %p169 = scmp.eq.s32.totalorder %s28, 0
      %p170 = por %p168, %p169
      %p171 = scmp.le.s32.totalorder 1, %s22
      %p172 = scmp.lt.s32.totalorder %s22, 9
      %p173 = pnand %p171, %p172
      %p174 = pneg %p173
      // Predicated region
      $region9: #{tpu_custom_call.1} parent=5 // pred_check
        _
      $region10: #{tpu_custom_call.1} parent=5 // pred_check_branch
        %176 = sbr.rel (%p173) target = $region12
      $region11: #{tpu_custom_call.1} parent=5 // pred_region
        %s177 = ssub.s32 %s22, 1
        // Predicated region
        $region13: #{tpu_custom_call.1} parent=11 // pred_check
          %p178 = pneg %p69
        $region14: #{tpu_custom_call.1} parent=11 // pred_check_branch
          %180 = sbr.rel (%p178) target = $region16
        $region15: #{tpu_custom_call.1} parent=11 // pred_region
          %s182 = ssub.s32 2048, 2048
          %183 = vsyncadd [#allocation8], %s182
          %s184 = sshll.u32 [#allocation7], 4
          %s185 = int_to_ptr.vmem [resolvable:$true] %s184
          %190 = dma.hbm_to_vmem [thread:$0]  %s1, 2048, %s185, [#allocation8], 128, 128, 8
        $region16: #{tpu_custom_call.1} parent=11 // pred_fallthru
          _
        // Predicated region
        $region17: #{tpu_custom_call.1} parent=11 // pred_check
          %p191 = pneg %p90
        $region18: #{tpu_custom_call.1} parent=11 // pred_check_branch
          %193 = sbr.rel (%p191) target = $region20
        $region19: #{tpu_custom_call.1} parent=11 // pred_region
          %s195 = ssub.s32 2048, 2048
          %196 = vsyncadd [#allocation8], %s195
          %s197 = sshll.u32 [#allocation9], 4
          %s198 = int_to_ptr.vmem [resolvable:$true] %s197
          %203 = dma.hbm_to_vmem [thread:$0]  %s2, 2048, %s198, [#allocation8], 128, 128, 8
        $region20: #{tpu_custom_call.1} parent=11 // pred_fallthru
          _
        // Predicated region
        $region21: #{tpu_custom_call.1} parent=11 // pred_check
          %p204 = pneg %p111
        $region22: #{tpu_custom_call.1} parent=11 // pred_check_branch
          %206 = sbr.rel (%p204) target = $region24
        $region23: #{tpu_custom_call.1} parent=11 // pred_region
          _
        $region24: #{tpu_custom_call.1} parent=11 // pred_fallthru
          _
      $region12: #{tpu_custom_call.1} parent=5 // pred_fallthru
        _
      %p207 = scmp.lt.s32.totalorder %s22, 8
      // Predicated region
      $region25: #{tpu_custom_call.1} parent=5 // pred_check
        %p208 = pneg %p207
      $region26: #{tpu_custom_call.1} parent=5 // pred_check_branch
        %210 = sbr.rel (%p208) target = $region28
      $region27: #{tpu_custom_call.1} parent=5 // pred_region
        // Predicated region
        $region29: #{tpu_custom_call.1} parent=27 // pred_check
          %p211 = pneg %p42
        $region30: #{tpu_custom_call.1} parent=27 // pred_check_branch
          %213 = sbr.rel (%p211) target = $region32
        $region31: #{tpu_custom_call.1} parent=27 // pred_region
          %s214 = sand.u32 %s32, 1
          %s215 = scalar_lea.sflag [#allocation5], %s214
          %s216 = sand.u32 %s32, 1
          %s217 = smul.addr %s216, 2
          %s218 = scalar_lea.vmem [#allocation4], %s217
          %s220 = ssub.s32 32, 32
          %221 = vsyncadd %s215, %s220
          %s222 = smul.addr %s22, 32
          %s223 = scalar_lea.hbm %s0, %s222
          %s225 = sshll.u32 %s218, 4
          %s226 = int_to_ptr.vmem [resolvable:$true] %s225
          %228 = dma.hbm_to_vmem [thread:$0]  %s223, 32, %s226, %s215
        $region32: #{tpu_custom_call.1} parent=27 // pred_fallthru
          _
      $region28: #{tpu_custom_call.1} parent=5 // pred_fallthru
        _
      %p229 = scmp.le.s32.totalorder 1, %s22
      %p230 = scmp.lt.s32.totalorder %s22, 9
      %p231 = pnand %p229, %p230
      %p232 = pneg %p231
      // Predicated region
      $region33: #{tpu_custom_call.1} parent=5 // pred_check
        _
      $region34: #{tpu_custom_call.1} parent=5 // pred_check_branch
        %234 = sbr.rel (%p231) target = $region36
      $region35: #{tpu_custom_call.1} parent=5 // pred_region
        %s235 = ssub.s32 %s22, 1
        %s236 = sand.u32 %s35, 1
        %s237 = scalar_lea.sflag [#allocation5], %s236
        %s238 = sand.u32 %s35, 1
        %s239 = smul.addr %s238, 2
        %s240 = scalar_lea.vmem [#allocation4], %s239
        // Predicated region
        $region37: #{tpu_custom_call.1} parent=35 // pred_check
          %p241 = pneg %p48
        $region38: #{tpu_custom_call.1} parent=35 // pred_check_branch
          %243 = sbr.rel (%p241) target = $region40
        $region39: #{tpu_custom_call.1} parent=35 // pred_region
          %244 = dma.done %s237, 32
        $region40: #{tpu_custom_call.1} parent=35 // pred_fallthru
          _
        // Predicated region
        $region41: #{tpu_custom_call.1} parent=35 // pred_check
          %p245 = pneg %p69
        $region42: #{tpu_custom_call.1} parent=35 // pred_check_branch
          %247 = sbr.rel (%p245) target = $region44
        $region43: #{tpu_custom_call.1} parent=35 // pred_region
          %248 = dma.done [#allocation8], 2048
        $region44: #{tpu_custom_call.1} parent=35 // pred_fallthru
          _
        // Predicated region
        $region45: #{tpu_custom_call.1} parent=35 // pred_check
          %p249 = pneg %p90
        $region46: #{tpu_custom_call.1} parent=35 // pred_check_branch
          %251 = sbr.rel (%p249) target = $region48
        $region47: #{tpu_custom_call.1} parent=35 // pred_region
          %252 = dma.done [#allocation8], 2048
        $region48: #{tpu_custom_call.1} parent=35 // pred_fallthru
          _
        %s253 = sand.u32 %s35, 1
        %s254 = scalar_lea.sflag [#allocation5], %s253
        %s255 = sand.u32 %s35, 1
        %s256 = smul.addr %s255, 2
        %s257 = scalar_lea.vmem [#allocation4], %s256
        %p258 = pneg %p48
        %p259 = pneg %p45
        %p260 = pneg %p69
        %p261 = pneg %p66
        %p262 = pneg %p90
        %p263 = pneg %p87
        %p264 = pneg %p111
        %p265 = pneg %p108
        %p266 = pneg %p137
        %p267 = pneg %p134
        %s268 = sand.u32 %s124, 1
        %s269 = scalar_lea.sflag [#allocation6], %s268
        %s270 = sand.u32 %s124, 1
        %s271 = smul.addr %s270, 2
        %s272 = scalar_lea.vmem [#allocation10], %s271
        %p273 = pneg %p163
        %p274 = pneg %p160
        %s275 = sand.u32 %s150, 1
        %s276 = scalar_lea.sflag [#allocation12], %s275
        %s277 = sand.u32 %s150, 1
        %s278 = smul.addr %s277, 2
        %s279 = scalar_lea.vmem [#allocation11], %s278
        %p280 = scmp.eq.s32.totalorder %s27, 0
        // Predicated region
        $region49: #{tpu_custom_call.1} parent=35 // pred_check
          %p281 = pneg %p280
        $region50: #{tpu_custom_call.1} parent=35 // pred_check_branch
          %283 = sbr.rel (%p281) target = $region52
        $region51: #{tpu_custom_call.1} parent=35 // pred_region
          %vm284 = vcmask 254976
          %285 = vst.msk [vmem:[#allocation2] sm:$0x3] %vm284, 0.0
          %286 = vst.msk [vmem:[#allocation3] sm:$0x3] %vm284, 0.0
        $region52: #{tpu_custom_call.1} parent=35 // pred_fallthru
          _
        %v287 = vld [vmem:[%s240] sm:$0x3]
        %v288 = vld [vmem:[#allocation2] sm:$0x3]
        %v289 = vld [vmem:[#allocation3] sm:$0x3]
        %v290 = vld [vmem:[#allocation7] sm:$0xff]
        %v291 = vld [vmem:[#allocation7 + $0x8] sm:$0xff]
        %v292 = vld [vmem:[#allocation7 + $0x10] sm:$0xff]
        %v293 = vld [vmem:[#allocation7 + $0x18] sm:$0xff]
        %v294 = vld [vmem:[#allocation9] sm:$0xff]
        %v295 = vld [vmem:[#allocation9 + $0x8] sm:$0xff]
        %v296 = vld [vmem:[#allocation9 + $0x10] sm:$0xff]
        %v297 = vld [vmem:[#allocation9 + $0x18] sm:$0xff]
        %vm298 = vcmask 261120
        %v300 = vsel %vm298, %v288, 0
        %302 = vmatprep.subr.mxu0 0.0
        %303 = vmatpush1.msra.mxu0 0.0
        %304 = vmatprep.subr.mxu0 0.0
        %305 = vmatpush1.msra.mxu0 0.0
        %306 = vmatprep.subr.mxu0 0.0
        %307 = vmatpush1.msra.mxu0 0.0
        %308 = vmatprep.subr.mxu0 0.0
        %309 = vmatpush1.msra.mxu0 0.0
        %310 = vmatprep.subr.mxu0 0.0
        %311 = vmatpush1.msra.mxu0 0.0
        %312 = vmatprep.subr.mxu0 0.0
        %313 = vmatpush1.msra.mxu0 0.0
        %314 = vmatprep.subr.mxu0 0.0
        %315 = vmatpush1.msra.mxu0 0.0
        %316 = vmatprep.subr.mxu0 0.0
        %317 = vmatpush1.msra.mxu0 0.0
        %318 = vmatprep.subr.mxu0 0.0
        %319 = vmatpush1.msra.mxu0 0.0
        %320 = vmatprep.subr.mxu0 0.0
        %321 = vmatpush1.msra.mxu0 0.0
        %322 = vmatprep.subr.mxu0 0.0
        %323 = vmatpush1.msra.mxu0 0.0
        %324 = vmatprep.subr.mxu0 0.0
        %325 = vmatpush1.msra.mxu0 0.0
        %326 = vmatprep.subr.mxu0 0.0
        %327 = vmatpush1.msra.mxu0 %v297
        %328 = vmatprep.subr.mxu0 0.0
        %329 = vmatpush1.msra.mxu0 %v296
        %330 = vmatprep.subr.mxu0 0.0
        %331 = vmatpush1.msra.mxu0 %v295
        %332 = vmatprep.subr.mxu0 0.0
        %333 = vmatpush1.msra.mxu0 %v294
        %334 = vmatprep.subr.mxu0 0.0
        %335 = vmatpush2.msra.mxu0 0.0
        %336 = vmatprep.subr.mxu0 0.0
        %337 = vmatpush2.msra.mxu0 0.0
        %338 = vmatprep.subr.mxu0 0.0
        %339 = vmatpush2.msra.mxu0 0.0
        %340 = vmatprep.subr.mxu0 0.0
        %341 = vmatpush2.msra.mxu0 0.0
        %342 = vmatprep.subr.mxu0 0.0
        %343 = vmatpush2.msra.mxu0 0.0
        %344 = vmatprep.subr.mxu0 0.0
        %345 = vmatpush2.msra.mxu0 0.0
        %346 = vmatprep.subr.mxu0 0.0
        %347 = vmatpush2.msra.mxu0 0.0
        %348 = vmatprep.subr.mxu0 0.0
        %349 = vmatpush2.msra.mxu0 0.0
        %350 = vmatprep.subr.mxu0 0.0
        %351 = vmatpush2.msra.mxu0 0.0
        %352 = vmatprep.subr.mxu0 0.0
        %353 = vmatpush2.msra.mxu0 0.0
        %354 = vmatprep.subr.mxu0 0.0
        %355 = vmatpush2.msra.mxu0 0.0
        %356 = vmatprep.subr.mxu0 0.0
        %357 = vmatpush2.msra.mxu0 0.0
        %358 = vmatprep.subr.mxu0 0.0
        %359 = vmatpush2.msra.mxu0 0.0
        %360 = vmatprep.subr.mxu0 0.0
        %361 = vmatpush2.msra.mxu0 0.0
        %362 = vmatprep.subr.mxu0 0.0
        %363 = vmatpush2.msra.mxu0 0.0
        %364 = vmatprep.subr.mxu0 0.0
        %365 = vmatpush2.msra.mxu0 0.0
        %366 = vmatprep.mubr.f32.mxu0 0.0
        %367 = vmatmul.mubr.f32.gmra.mxu0 %v300
        %v368 = vpop.f32.mrf.mxu0
        %v369 = vadd.f32 0.0, %v368
        %v370 = vpop.f32.mrf.mxu0
        %371 = vdwg.mxu0
        %v373 = vsel %vm298, %v287, 0
        %375 = vmatprep.subr.mxu0 0.0
        %376 = vmatpush1.msra.mxu0 0.0
        %377 = vmatprep.subr.mxu0 0.0
        %378 = vmatpush1.msra.mxu0 0.0
        %379 = vmatprep.subr.mxu0 0.0
        %380 = vmatpush1.msra.mxu0 0.0
        %381 = vmatprep.subr.mxu0 0.0
        %382 = vmatpush1.msra.mxu0 0.0
        %383 = vmatprep.subr.mxu0 0.0
        %384 = vmatpush1.msra.mxu0 0.0
        %385 = vmatprep.subr.mxu0 0.0
        %386 = vmatpush1.msra.mxu0 0.0
        %387 = vmatprep.subr.mxu0 0.0
        %388 = vmatpush1.msra.mxu0 0.0
        %389 = vmatprep.subr.mxu0 0.0
        %390 = vmatpush1.msra.mxu0 0.0
        %391 = vmatprep.subr.mxu0 0.0
        %392 = vmatpush1.msra.mxu0 0.0
        %393 = vmatprep.subr.mxu0 0.0
        %394 = vmatpush1.msra.mxu0 0.0
        %395 = vmatprep.subr.mxu0 0.0
        %396 = vmatpush1.msra.mxu0 0.0
        %397 = vmatprep.subr.mxu0 0.0
        %398 = vmatpush1.msra.mxu0 0.0
        %399 = vmatprep.subr.mxu0 0.0
        %400 = vmatpush1.msra.mxu0 %v293
        %401 = vmatprep.subr.mxu0 0.0
        %402 = vmatpush1.msra.mxu0 %v292
        %403 = vmatprep.subr.mxu0 0.0
        %404 = vmatpush1.msra.mxu0 %v291
        %405 = vmatprep.subr.mxu0 0.0
        %406 = vmatpush1.msra.mxu0 %v290
        %407 = vmatprep.subr.mxu0 0.0
        %408 = vmatpush2.msra.mxu0 0.0
        %409 = vmatprep.subr.mxu0 0.0
        %410 = vmatpush2.msra.mxu0 0.0
        %411 = vmatprep.subr.mxu0 0.0
        %412 = vmatpush2.msra.mxu0 0.0
        %413 = vmatprep.subr.mxu0 0.0
        %414 = vmatpush2.msra.mxu0 0.0
        %415 = vmatprep.subr.mxu0 0.0
        %416 = vmatpush2.msra.mxu0 0.0
        %417 = vmatprep.subr.mxu0 0.0
        %418 = vmatpush2.msra.mxu0 0.0
        %419 = vmatprep.subr.mxu0 0.0
        %420 = vmatpush2.msra.mxu0 0.0
        %421 = vmatprep.subr.mxu0 0.0
        %422 = vmatpush2.msra.mxu0 0.0
        %423 = vmatprep.subr.mxu0 0.0
        %424 = vmatpush2.msra.mxu0 0.0
        %425 = vmatprep.subr.mxu0 0.0
        %426 = vmatpush2.msra.mxu0 0.0
        %427 = vmatprep.subr.mxu0 0.0
        %428 = vmatpush2.msra.mxu0 0.0
        %429 = vmatprep.subr.mxu0 0.0
        %430 = vmatpush2.msra.mxu0 0.0
        %431 = vmatprep.subr.mxu0 0.0
        %432 = vmatpush2.msra.mxu0 0.0
        %433 = vmatprep.subr.mxu0 0.0
        %434 = vmatpush2.msra.mxu0 0.0
        %435 = vmatprep.subr.mxu0 0.0
        %436 = vmatpush2.msra.mxu0 0.0
        %437 = vmatprep.subr.mxu0 0.0
        %438 = vmatpush2.msra.mxu0 0.0
        %439 = vmatprep.mubr.f32.mxu0 0.0
        %440 = vmatmul.mubr.f32.gmra.mxu0 %v373
        %v441 = vpop.f32.mrf.mxu0
        %v442 = vadd.f32 %v369, %v441
        %v443 = vpop.f32.mrf.mxu0
        %444 = vdwg.mxu0
        %v445 = vld [vmem:[%s3] sm:$0x1]
        %v447 = vlaneseq
        %v448 = vshrl.u32 %v447, 7
        %v449 = vsub.s32 0, %v448
        %v450 = vrot.slane %v445, %v449
        %v452 = vadd.f32 %v442, %v450
        %v453 = vsub.f32 0.0, %v452
        %v454 = vmul.f32 %v453, 1.442695
        %v455 = vpow.pop %v454
        %v456 = vadd.f32 %v455, 1.0
        %v457 = vrcp.pop %v456
        %v458 = vmul.f32 1.0, %v457
        %s459 = scalar_lea.vmem [#allocation7], 32
        %v460 = vld [vmem:[%s459] sm:$0xff]
        %v461 = vld [vmem:[%s459 + $0x8] sm:$0xff]
        %v462 = vld [vmem:[%s459 + $0x10] sm:$0xff]
        %v463 = vld [vmem:[%s459 + $0x18] sm:$0xff]
        %s464 = scalar_lea.vmem [#allocation9], 32
        %v465 = vld [vmem:[%s464] sm:$0xff]
        %v466 = vld [vmem:[%s464 + $0x8] sm:$0xff]
        %v467 = vld [vmem:[%s464 + $0x10] sm:$0xff]
        %v468 = vld [vmem:[%s464 + $0x18] sm:$0xff]
        %469 = vmatprep.subr.mxu0 0.0
        %470 = vmatpush1.msra.mxu0 0.0
        %471 = vmatprep.subr.mxu0 0.0
        %472 = vmatpush1.msra.mxu0 0.0
        %473 = vmatprep.subr.mxu0 0.0
        %474 = vmatpush1.msra.mxu0 0.0
        %475 = vmatprep.subr.mxu0 0.0
        %476 = vmatpush1.msra.mxu0 0.0
        %477 = vmatprep.subr.mxu0 0.0
        %478 = vmatpush1.msra.mxu0 0.0
        %479 = vmatprep.subr.mxu0 0.0
        %480 = vmatpush1.msra.mxu0 0.0
        %481 = vmatprep.subr.mxu0 0.0
        %482 = vmatpush1.msra.mxu0 0.0
        %483 = vmatprep.subr.mxu0 0.0
        %484 = vmatpush1.msra.mxu0 0.0
        %485 = vmatprep.subr.mxu0 0.0
        %486 = vmatpush1.msra.mxu0 0.0
        %487 = vmatprep.subr.mxu0 0.0
        %488 = vmatpush1.msra.mxu0 0.0
        %489 = vmatprep.subr.mxu0 0.0
        %490 = vmatpush1.msra.mxu0 0.0
        %491 = vmatprep.subr.mxu0 0.0
        %492 = vmatpush1.msra.mxu0 0.0
        %493 = vmatprep.subr.mxu0 0.0
        %494 = vmatpush1.msra.mxu0 %v468
        %495 = vmatprep.subr.mxu0 0.0
        %496 = vmatpush1.msra.mxu0 %v467
        %497 = vmatprep.subr.mxu0 0.0
        %498 = vmatpush1.msra.mxu0 %v466
        %499 = vmatprep.subr.mxu0 0.0
        %500 = vmatpush1.msra.mxu0 %v465
        %501 = vmatprep.subr.mxu0 0.0
        %502 = vmatpush2.msra.mxu0 0.0
        %503 = vmatprep.subr.mxu0 0.0
        %504 = vmatpush2.msra.mxu0 0.0
        %505 = vmatprep.subr.mxu0 0.0
        %506 = vmatpush2.msra.mxu0 0.0
        %507 = vmatprep.subr.mxu0 0.0
        %508 = vmatpush2.msra.mxu0 0.0
        %509 = vmatprep.subr.mxu0 0.0
        %510 = vmatpush2.msra.mxu0 0.0
        %511 = vmatprep.subr.mxu0 0.0
        %512 = vmatpush2.msra.mxu0 0.0
        %513 = vmatprep.subr.mxu0 0.0
        %514 = vmatpush2.msra.mxu0 0.0
        %515 = vmatprep.subr.mxu0 0.0
        %516 = vmatpush2.msra.mxu0 0.0
        %517 = vmatprep.subr.mxu0 0.0
        %518 = vmatpush2.msra.mxu0 0.0
        %519 = vmatprep.subr.mxu0 0.0
        %520 = vmatpush2.msra.mxu0 0.0
        %521 = vmatprep.subr.mxu0 0.0
        %522 = vmatpush2.msra.mxu0 0.0
        %523 = vmatprep.subr.mxu0 0.0
        %524 = vmatpush2.msra.mxu0 0.0
        %525 = vmatprep.subr.mxu0 0.0
        %526 = vmatpush2.msra.mxu0 0.0
        %527 = vmatprep.subr.mxu0 0.0
        %528 = vmatpush2.msra.mxu0 0.0
        %529 = vmatprep.subr.mxu0 0.0
        %530 = vmatpush2.msra.mxu0 0.0
        %531 = vmatprep.subr.mxu0 0.0
        %532 = vmatpush2.msra.mxu0 0.0
        %533 = vmatprep.mubr.f32.mxu0 0.0
        %534 = vmatmul.mubr.f32.gmra.mxu0 %v300
        %v535 = vpop.f32.mrf.mxu0
        %v536 = vadd.f32 0.0, %v535
        %v537 = vpop.f32.mrf.mxu0
        %538 = vdwg.mxu0
        %539 = vmatprep.subr.mxu0 0.0
        %540 = vmatpush1.msra.mxu0 0.0
        %541 = vmatprep.subr.mxu0 0.0
        %542 = vmatpush1.msra.mxu0 0.0
        %543 = vmatprep.subr.mxu0 0.0
        %544 = vmatpush1.msra.mxu0 0.0
        %545 = vmatprep.subr.mxu0 0.0
        %546 = vmatpush1.msra.mxu0 0.0
        %547 = vmatprep.subr.mxu0 0.0
        %548 = vmatpush1.msra.mxu0 0.0
        %549 = vmatprep.subr.mxu0 0.0
        %550 = vmatpush1.msra.mxu0 0.0
        %551 = vmatprep.subr.mxu0 0.0
        %552 = vmatpush1.msra.mxu0 0.0
        %553 = vmatprep.subr.mxu0 0.0
        %554 = vmatpush1.msra.mxu0 0.0
        %555 = vmatprep.subr.mxu0 0.0
        %556 = vmatpush1.msra.mxu0 0.0
        %557 = vmatprep.subr.mxu0 0.0
        %558 = vmatpush1.msra.mxu0 0.0
        %559 = vmatprep.subr.mxu0 0.0
        %560 = vmatpush1.msra.mxu0 0.0
        %561 = vmatprep.subr.mxu0 0.0
        %562 = vmatpush1.msra.mxu0 0.0
        %563 = vmatprep.subr.mxu0 0.0
        %564 = vmatpush1.msra.mxu0 %v463
        %565 = vmatprep.subr.mxu0 0.0
        %566 = vmatpush1.msra.mxu0 %v462
        %567 = vmatprep.subr.mxu0 0.0
        %568 = vmatpush1.msra.mxu0 %v461
        %569 = vmatprep.subr.mxu0 0.0
        %570 = vmatpush1.msra.mxu0 %v460
        %571 = vmatprep.subr.mxu0 0.0
        %572 = vmatpush2.msra.mxu0 0.0
        %573 = vmatprep.subr.mxu0 0.0
        %574 = vmatpush2.msra.mxu0 0.0
        %575 = vmatprep.subr.mxu0 0.0
        %576 = vmatpush2.msra.mxu0 0.0
        %577 = vmatprep.subr.mxu0 0.0
        %578 = vmatpush2.msra.mxu0 0.0
        %579 = vmatprep.subr.mxu0 0.0
        %580 = vmatpush2.msra.mxu0 0.0
        %581 = vmatprep.subr.mxu0 0.0
        %582 = vmatpush2.msra.mxu0 0.0
        %583 = vmatprep.subr.mxu0 0.0
        %584 = vmatpush2.msra.mxu0 0.0
        %585 = vmatprep.subr.mxu0 0.0
        %586 = vmatpush2.msra.mxu0 0.0
        %587 = vmatprep.subr.mxu0 0.0
        %588 = vmatpush2.msra.mxu0 0.0
        %589 = vmatprep.subr.mxu0 0.0
        %590 = vmatpush2.msra.mxu0 0.0
        %591 = vmatprep.subr.mxu0 0.0
        %592 = vmatpush2.msra.mxu0 0.0
        %593 = vmatprep.subr.mxu0 0.0
        %594 = vmatpush2.msra.mxu0 0.0
        %595 = vmatprep.subr.mxu0 0.0
        %596 = vmatpush2.msra.mxu0 0.0
        %597 = vmatprep.subr.mxu0 0.0
        %598 = vmatpush2.msra.mxu0 0.0
        %599 = vmatprep.subr.mxu0 0.0
        %600 = vmatpush2.msra.mxu0 0.0
        %601 = vmatprep.subr.mxu0 0.0
        %602 = vmatpush2.msra.mxu0 0.0
        %603 = vmatprep.mubr.f32.mxu0 0.0
        %604 = vmatmul.mubr.f32.gmra.mxu0 %v373
        %v605 = vpop.f32.mrf.mxu0
        %v606 = vadd.f32 %v536, %v605
        %v607 = vpop.f32.mrf.mxu0
        %608 = vdwg.mxu0
        %s609 = scalar_lea.vmem %s3, 1
        %v610 = vld [vmem:[%s609] sm:$0x1]
        %v612 = vlaneseq
        %v613 = vshrl.u32 %v612, 7
        %v614 = vsub.s32 0, %v613
        %v615 = vrot.slane %v610, %v614
        %v617 = vadd.f32 %v606, %v615
        %v618 = vsub.f32 0.0, %v617
        %v619 = vmul.f32 %v618, 1.442695
        %v620 = vpow.pop %v619
        %v621 = vadd.f32 %v620, 1.0
        %v622 = vrcp.pop %v621
        %v623 = vmul.f32 1.0, %v622
        %s624 = scalar_lea.vmem [#allocation7], 64
        %v625 = vld [vmem:[%s624] sm:$0xff]
        %v626 = vld [vmem:[%s624 + $0x8] sm:$0xff]
        %v627 = vld [vmem:[%s624 + $0x10] sm:$0xff]
        %v628 = vld [vmem:[%s624 + $0x18] sm:$0xff]
        %s629 = scalar_lea.vmem [#allocation9], 64
        %v630 = vld [vmem:[%s629] sm:$0xff]
        %v631 = vld [vmem:[%s629 + $0x8] sm:$0xff]
        %v632 = vld [vmem:[%s629 + $0x10] sm:$0xff]
        %v633 = vld [vmem:[%s629 + $0x18] sm:$0xff]
        %634 = vmatprep.subr.mxu0 0.0
        %635 = vmatpush1.msra.mxu0 0.0
        %636 = vmatprep.subr.mxu0 0.0
        %637 = vmatpush1.msra.mxu0 0.0
        %638 = vmatprep.subr.mxu0 0.0
        %639 = vmatpush1.msra.mxu0 0.0
        %640 = vmatprep.subr.mxu0 0.0
        %641 = vmatpush1.msra.mxu0 0.0
        %642 = vmatprep.subr.mxu0 0.0
        %643 = vmatpush1.msra.mxu0 0.0
        %644 = vmatprep.subr.mxu0 0.0
        %645 = vmatpush1.msra.mxu0 0.0
        %646 = vmatprep.subr.mxu0 0.0
        %647 = vmatpush1.msra.mxu0 0.0
        %648 = vmatprep.subr.mxu0 0.0
        %649 = vmatpush1.msra.mxu0 0.0
        %650 = vmatprep.subr.mxu0 0.0
        %651 = vmatpush1.msra.mxu0 0.0
        %652 = vmatprep.subr.mxu0 0.0
        %653 = vmatpush1.msra.mxu0 0.0
        %654 = vmatprep.subr.mxu0 0.0
        %655 = vmatpush1.msra.mxu0 0.0
        %656 = vmatprep.subr.mxu0 0.0
        %657 = vmatpush1.msra.mxu0 0.0
        %658 = vmatprep.subr.mxu0 0.0
        %659 = vmatpush1.msra.mxu0 %v633
        %660 = vmatprep.subr.mxu0 0.0
        %661 = vmatpush1.msra.mxu0 %v632
        %662 = vmatprep.subr.mxu0 0.0
        %663 = vmatpush1.msra.mxu0 %v631
        %664 = vmatprep.subr.mxu0 0.0
        %665 = vmatpush1.msra.mxu0 %v630
        %666 = vmatprep.subr.mxu0 0.0
        %667 = vmatpush2.msra.mxu0 0.0
        %668 = vmatprep.subr.mxu0 0.0
        %669 = vmatpush2.msra.mxu0 0.0
        %670 = vmatprep.subr.mxu0 0.0
        %671 = vmatpush2.msra.mxu0 0.0
        %672 = vmatprep.subr.mxu0 0.0
        %673 = vmatpush2.msra.mxu0 0.0
        %674 = vmatprep.subr.mxu0 0.0
        %675 = vmatpush2.msra.mxu0 0.0
        %676 = vmatprep.subr.mxu0 0.0
        %677 = vmatpush2.msra.mxu0 0.0
        %678 = vmatprep.subr.mxu0 0.0
        %679 = vmatpush2.msra.mxu0 0.0
        %680 = vmatprep.subr.mxu0 0.0
        %681 = vmatpush2.msra.mxu0 0.0
        %682 = vmatprep.subr.mxu0 0.0
        %683 = vmatpush2.msra.mxu0 0.0
        %684 = vmatprep.subr.mxu0 0.0
        %685 = vmatpush2.msra.mxu0 0.0
        %686 = vmatprep.subr.mxu0 0.0
        %687 = vmatpush2.msra.mxu0 0.0
        %688 = vmatprep.subr.mxu0 0.0
        %689 = vmatpush2.msra.mxu0 0.0
        %690 = vmatprep.subr.mxu0 0.0
        %691 = vmatpush2.msra.mxu0 0.0
        %692 = vmatprep.subr.mxu0 0.0
        %693 = vmatpush2.msra.mxu0 0.0
        %694 = vmatprep.subr.mxu0 0.0
        %695 = vmatpush2.msra.mxu0 0.0
        %696 = vmatprep.subr.mxu0 0.0
        %697 = vmatpush2.msra.mxu0 0.0
        %698 = vmatprep.mubr.f32.mxu0 0.0
        %699 = vmatmul.mubr.f32.gmra.mxu0 %v300
        %v700 = vpop.f32.mrf.mxu0
        %v701 = vadd.f32 0.0, %v700
        %v702 = vpop.f32.mrf.mxu0
        %703 = vdwg.mxu0
        %704 = vmatprep.subr.mxu0 0.0
        %705 = vmatpush1.msra.mxu0 0.0
        %706 = vmatprep.subr.mxu0 0.0
        %707 = vmatpush1.msra.mxu0 0.0
        %708 = vmatprep.subr.mxu0 0.0
        %709 = vmatpush1.msra.mxu0 0.0
        %710 = vmatprep.subr.mxu0 0.0
        %711 = vmatpush1.msra.mxu0 0.0
        %712 = vmatprep.subr.mxu0 0.0
        %713 = vmatpush1.msra.mxu0 0.0
        %714 = vmatprep.subr.mxu0 0.0
        %715 = vmatpush1.msra.mxu0 0.0
        %716 = vmatprep.subr.mxu0 0.0
        %717 = vmatpush1.msra.mxu0 0.0
        %718 = vmatprep.subr.mxu0 0.0
        %719 = vmatpush1.msra.mxu0 0.0
        %720 = vmatprep.subr.mxu0 0.0
        %721 = vmatpush1.msra.mxu0 0.0
        %722 = vmatprep.subr.mxu0 0.0
        %723 = vmatpush1.msra.mxu0 0.0
        %724 = vmatprep.subr.mxu0 0.0
        %725 = vmatpush1.msra.mxu0 0.0
        %726 = vmatprep.subr.mxu0 0.0
        %727 = vmatpush1.msra.mxu0 0.0
        %728 = vmatprep.subr.mxu0 0.0
        %729 = vmatpush1.msra.mxu0 %v628
        %730 = vmatprep.subr.mxu0 0.0
        %731 = vmatpush1.msra.mxu0 %v627
        %732 = vmatprep.subr.mxu0 0.0
        %733 = vmatpush1.msra.mxu0 %v626
        %734 = vmatprep.subr.mxu0 0.0
        %735 = vmatpush1.msra.mxu0 %v625
        %736 = vmatprep.subr.mxu0 0.0
        %737 = vmatpush2.msra.mxu0 0.0
        %738 = vmatprep.subr.mxu0 0.0
        %739 = vmatpush2.msra.mxu0 0.0
        %740 = vmatprep.subr.mxu0 0.0
        %741 = vmatpush2.msra.mxu0 0.0
        %742 = vmatprep.subr.mxu0 0.0
        %743 = vmatpush2.msra.mxu0 0.0
        %744 = vmatprep.subr.mxu0 0.0
        %745 = vmatpush2.msra.mxu0 0.0
        %746 = vmatprep.subr.mxu0 0.0
        %747 = vmatpush2.msra.mxu0 0.0
        %748 = vmatprep.subr.mxu0 0.0
        %749 = vmatpush2.msra.mxu0 0.0
        %750 = vmatprep.subr.mxu0 0.0
        %751 = vmatpush2.msra.mxu0 0.0
        %752 = vmatprep.subr.mxu0 0.0
        %753 = vmatpush2.msra.mxu0 0.0
        %754 = vmatprep.subr.mxu0 0.0
        %755 = vmatpush2.msra.mxu0 0.0
        %756 = vmatprep.subr.mxu0 0.0
        %757 = vmatpush2.msra.mxu0 0.0
        %758 = vmatprep.subr.mxu0 0.0
        %759 = vmatpush2.msra.mxu0 0.0
        %760 = vmatprep.subr.mxu0 0.0
        %761 = vmatpush2.msra.mxu0 0.0
        %762 = vmatprep.subr.mxu0 0.0
        %763 = vmatpush2.msra.mxu0 0.0
        %764 = vmatprep.subr.mxu0 0.0
        %765 = vmatpush2.msra.mxu0 0.0
        %766 = vmatprep.subr.mxu0 0.0
        %767 = vmatpush2.msra.mxu0 0.0
        %768 = vmatprep.mubr.f32.mxu0 0.0
        %769 = vmatmul.mubr.f32.gmra.mxu0 %v373
        %v770 = vpop.f32.mrf.mxu0
        %v771 = vadd.f32 %v701, %v770
        %v772 = vpop.f32.mrf.mxu0
        %773 = vdwg.mxu0
        %s774 = scalar_lea.vmem %s3, 2
        %v775 = vld [vmem:[%s774] sm:$0x1]
        %v777 = vlaneseq
        %v778 = vshrl.u32 %v777, 7
        %v779 = vsub.s32 0, %v778
        %v780 = vrot.slane %v775, %v779
        %v782 = vadd.f32 %v771, %v780
        %v783 = vtanh.pop %v782
        %s784 = scalar_lea.vmem [#allocation7], 96
        %v785 = vld [vmem:[%s784] sm:$0xff]
        %v786 = vld [vmem:[%s784 + $0x8] sm:$0xff]
        %v787 = vld [vmem:[%s784 + $0x10] sm:$0xff]
        %v788 = vld [vmem:[%s784 + $0x18] sm:$0xff]
        %s789 = scalar_lea.vmem [#allocation9], 96
        %v790 = vld [vmem:[%s789] sm:$0xff]
        %v791 = vld [vmem:[%s789 + $0x8] sm:$0xff]
        %v792 = vld [vmem:[%s789 + $0x10] sm:$0xff]
        %v793 = vld [vmem:[%s789 + $0x18] sm:$0xff]
        %794 = vmatprep.subr.mxu0 0.0
        %795 = vmatpush1.msra.mxu0 0.0
        %796 = vmatprep.subr.mxu0 0.0
        %797 = vmatpush1.msra.mxu0 0.0
        %798 = vmatprep.subr.mxu0 0.0
        %799 = vmatpush1.msra.mxu0 0.0
        %800 = vmatprep.subr.mxu0 0.0
        %801 = vmatpush1.msra.mxu0 0.0
        %802 = vmatprep.subr.mxu0 0.0
        %803 = vmatpush1.msra.mxu0 0.0
        %804 = vmatprep.subr.mxu0 0.0
        %805 = vmatpush1.msra.mxu0 0.0
        %806 = vmatprep.subr.mxu0 0.0
        %807 = vmatpush1.msra.mxu0 0.0
        %808 = vmatprep.subr.mxu0 0.0
        %809 = vmatpush1.msra.mxu0 0.0
        %810 = vmatprep.subr.mxu0 0.0
        %811 = vmatpush1.msra.mxu0 0.0
        %812 = vmatprep.subr.mxu0 0.0
        %813 = vmatpush1.msra.mxu0 0.0
        %814 = vmatprep.subr.mxu0 0.0
        %815 = vmatpush1.msra.mxu0 0.0
        %816 = vmatprep.subr.mxu0 0.0
        %817 = vmatpush1.msra.mxu0 0.0
        %818 = vmatprep.subr.mxu0 0.0
        %819 = vmatpush1.msra.mxu0 %v793
        %820 = vmatprep.subr.mxu0 0.0
        %821 = vmatpush1.msra.mxu0 %v792
        %822 = vmatprep.subr.mxu0 0.0
        %823 = vmatpush1.msra.mxu0 %v791
        %824 = vmatprep.subr.mxu0 0.0
        %825 = vmatpush1.msra.mxu0 %v790
        %826 = vmatprep.subr.mxu0 0.0
        %827 = vmatpush2.msra.mxu0 0.0
        %828 = vmatprep.subr.mxu0 0.0
        %829 = vmatpush2.msra.mxu0 0.0
        %830 = vmatprep.subr.mxu0 0.0
        %831 = vmatpush2.msra.mxu0 0.0
        %832 = vmatprep.subr.mxu0 0.0
        %833 = vmatpush2.msra.mxu0 0.0
        %834 = vmatprep.subr.mxu0 0.0
        %835 = vmatpush2.msra.mxu0 0.0
        %836 = vmatprep.subr.mxu0 0.0
        %837 = vmatpush2.msra.mxu0 0.0
        %838 = vmatprep.subr.mxu0 0.0
        %839 = vmatpush2.msra.mxu0 0.0
        %840 = vmatprep.subr.mxu0 0.0
        %841 = vmatpush2.msra.mxu0 0.0
        %842 = vmatprep.subr.mxu0 0.0
        %843 = vmatpush2.msra.mxu0 0.0
        %844 = vmatprep.subr.mxu0 0.0
        %845 = vmatpush2.msra.mxu0 0.0
        %846 = vmatprep.subr.mxu0 0.0
        %847 = vmatpush2.msra.mxu0 0.0
        %848 = vmatprep.subr.mxu0 0.0
        %849 = vmatpush2.msra.mxu0 0.0
        %850 = vmatprep.subr.mxu0 0.0
        %851 = vmatpush2.msra.mxu0 0.0
        %852 = vmatprep.subr.mxu0 0.0
        %853 = vmatpush2.msra.mxu0 0.0
        %854 = vmatprep.subr.mxu0 0.0
        %855 = vmatpush2.msra.mxu0 0.0
        %856 = vmatprep.subr.mxu0 0.0
        %857 = vmatpush2.msra.mxu0 0.0
        %858 = vmatprep.mubr.f32.mxu0 0.0
        %859 = vmatmul.mubr.f32.gmra.mxu0 %v300
        %v860 = vpop.f32.mrf.mxu0
        %v861 = vadd.f32 0.0, %v860
        %v862 = vpop.f32.mrf.mxu0
        %863 = vdwg.mxu0
        %864 = vmatprep.subr.mxu0 0.0
        %865 = vmatpush1.msra.mxu0 0.0
        %866 = vmatprep.subr.mxu0 0.0
        %867 = vmatpush1.msra.mxu0 0.0
        %868 = vmatprep.subr.mxu0 0.0
        %869 = vmatpush1.msra.mxu0 0.0
        %870 = vmatprep.subr.mxu0 0.0
        %871 = vmatpush1.msra.mxu0 0.0
        %872 = vmatprep.subr.mxu0 0.0
        %873 = vmatpush1.msra.mxu0 0.0
        %874 = vmatprep.subr.mxu0 0.0
        %875 = vmatpush1.msra.mxu0 0.0
        %876 = vmatprep.subr.mxu0 0.0
        %877 = vmatpush1.msra.mxu0 0.0
        %878 = vmatprep.subr.mxu0 0.0
        %879 = vmatpush1.msra.mxu0 0.0
        %880 = vmatprep.subr.mxu0 0.0
        %881 = vmatpush1.msra.mxu0 0.0
        %882 = vmatprep.subr.mxu0 0.0
        %883 = vmatpush1.msra.mxu0 0.0
        %884 = vmatprep.subr.mxu0 0.0
        %885 = vmatpush1.msra.mxu0 0.0
        %886 = vmatprep.subr.mxu0 0.0
        %887 = vmatpush1.msra.mxu0 0.0
        %888 = vmatprep.subr.mxu0 0.0
        %889 = vmatpush1.msra.mxu0 %v788
        %890 = vmatprep.subr.mxu0 0.0
        %891 = vmatpush1.msra.mxu0 %v787
        %892 = vmatprep.subr.mxu0 0.0
        %893 = vmatpush1.msra.mxu0 %v786
        %894 = vmatprep.subr.mxu0 0.0
        %895 = vmatpush1.msra.mxu0 %v785
        %896 = vmatprep.subr.mxu0 0.0
        %897 = vmatpush2.msra.mxu0 0.0
        %898 = vmatprep.subr.mxu0 0.0
        %899 = vmatpush2.msra.mxu0 0.0
        %900 = vmatprep.subr.mxu0 0.0
        %901 = vmatpush2.msra.mxu0 0.0
        %902 = vmatprep.subr.mxu0 0.0
        %903 = vmatpush2.msra.mxu0 0.0
        %904 = vmatprep.subr.mxu0 0.0
        %905 = vmatpush2.msra.mxu0 0.0
        %906 = vmatprep.subr.mxu0 0.0
        %907 = vmatpush2.msra.mxu0 0.0
        %908 = vmatprep.subr.mxu0 0.0
        %909 = vmatpush2.msra.mxu0 0.0
        %910 = vmatprep.subr.mxu0 0.0
        %911 = vmatpush2.msra.mxu0 0.0
        %912 = vmatprep.subr.mxu0 0.0
        %913 = vmatpush2.msra.mxu0 0.0
        %914 = vmatprep.subr.mxu0 0.0
        %915 = vmatpush2.msra.mxu0 0.0
        %916 = vmatprep.subr.mxu0 0.0
        %917 = vmatpush2.msra.mxu0 0.0
        %918 = vmatprep.subr.mxu0 0.0
        %919 = vmatpush2.msra.mxu0 0.0
        %920 = vmatprep.subr.mxu0 0.0
        %921 = vmatpush2.msra.mxu0 0.0
        %922 = vmatprep.subr.mxu0 0.0
        %923 = vmatpush2.msra.mxu0 0.0
        %924 = vmatprep.subr.mxu0 0.0
        %925 = vmatpush2.msra.mxu0 0.0
        %926 = vmatprep.subr.mxu0 0.0
        %927 = vmatpush2.msra.mxu0 0.0
        %928 = vmatprep.mubr.f32.mxu0 0.0
        %929 = vmatmul.mubr.f32.gmra.mxu0 %v373
        %v930 = vpop.f32.mrf.mxu0
        %v931 = vadd.f32 %v861, %v930
        %v932 = vpop.f32.mrf.mxu0
        %933 = vdwg.mxu0
        %s934 = scalar_lea.vmem %s3, 3
        %v935 = vld [vmem:[%s934] sm:$0x1]
        %v937 = vlaneseq
        %v938 = vshrl.u32 %v937, 7
        %v939 = vsub.s32 0, %v938
        %v940 = vrot.slane %v935, %v939
        %v942 = vadd.f32 %v931, %v940
        %v943 = vsub.f32 0.0, %v942
        %v944 = vmul.f32 %v943, 1.442695
        %v945 = vpow.pop %v944
        %v946 = vadd.f32 %v945, 1.0
        %v947 = vrcp.pop %v946
        %v948 = vmul.f32 1.0, %v947
        %v949 = vmul.f32 %v623, %v289
        %v950 = vmul.f32 %v458, %v783
        %v951 = vadd.f32 %v949, %v950
        %v952 = vtanh.pop %v951
        %v953 = vmul.f32 %v948, %v952
        %vm954 = vcmask 254976
        %955 = vst.msk [vmem:[#allocation2] sm:$0x3] %vm954, %v953
        %956 = vst.msk [vmem:[#allocation3] sm:$0x3] %vm954, %v951
        %957 = vst.msk [vmem:[%s272] sm:$0x3] %vm954, %v953
        %958 = vst.msk [vmem:[%s279] sm:$0x3] %vm954, %v951
        %s959 = sand.u32 %s124, 1
        %s960 = scalar_lea.sflag [#allocation6], %s959
        %s961 = sand.u32 %s124, 1
        %s962 = smul.addr %s961, 2
        %s963 = scalar_lea.vmem [#allocation10], %s962
        %s964 = sand.u32 %s150, 1
        %s965 = scalar_lea.sflag [#allocation12], %s964
        %s966 = sand.u32 %s150, 1
        %s967 = smul.addr %s966, 2
        %s968 = scalar_lea.vmem [#allocation11], %s967
        // Predicated region
        $region53: #{tpu_custom_call.1} parent=35 // pred_check
          %p969 = pneg %p134
        $region54: #{tpu_custom_call.1} parent=35 // pred_check_branch
          %971 = sbr.rel (%p969) target = $region56
        $region55: #{tpu_custom_call.1} parent=35 // pred_region
          %s973 = ssub.s32 32, 32
          %974 = vsyncadd %s960, %s973
          %s975 = smul.addr %s27, 32
          %s976 = scalar_lea.hbm %s4, %s975
          %s978 = sshll.u32 %s963, 4
          %s979 = int_to_ptr.vmem [resolvable:$true] %s978
          %981 = dma.vmem_to_hbm [thread:$0]  %s979, 32, %s976, %s960
        $region56: #{tpu_custom_call.1} parent=35 // pred_fallthru
          _
        // Predicated region
        $region57: #{tpu_custom_call.1} parent=35 // pred_check
          %p982 = pneg %p160
        $region58: #{tpu_custom_call.1} parent=35 // pred_check_branch
          %984 = sbr.rel (%p982) target = $region60
        $region59: #{tpu_custom_call.1} parent=35 // pred_region
          %s986 = ssub.s32 32, 32
          %987 = vsyncadd %s965, %s986
          %s988 = smul.addr %s27, 32
          %s989 = scalar_lea.hbm %s5, %s988
          %s991 = sshll.u32 %s968, 4
          %s992 = int_to_ptr.vmem [resolvable:$true] %s991
          %994 = dma.vmem_to_hbm [thread:$0]  %s992, 32, %s989, %s965
        $region60: #{tpu_custom_call.1} parent=35 // pred_fallthru
          _
      $region36: #{tpu_custom_call.1} parent=5 // pred_fallthru
        _
      %p995 = scmp.le.s32.totalorder 2, %s22
      // Predicated region
      $region61: #{tpu_custom_call.1} parent=5 // pred_check
        %p996 = pneg %p995
      $region62: #{tpu_custom_call.1} parent=5 // pred_check_branch
        %998 = sbr.rel (%p996) target = $region64
      $region63: #{tpu_custom_call.1} parent=5 // pred_region
        %s999 = ssub.s32 %s22, 2
        // Predicated region
        $region65: #{tpu_custom_call.1} parent=63 // pred_check
          %p1000 = pneg %p140
        $region66: #{tpu_custom_call.1} parent=63 // pred_check_branch
          %1002 = sbr.rel (%p1000) target = $region68
        $region67: #{tpu_custom_call.1} parent=63 // pred_region
          %s1003 = sand.u32 %s125, 1
          %s1004 = scalar_lea.sflag [#allocation6], %s1003
          %s1005 = sand.u32 %s125, 1
          %s1006 = smul.addr %s1005, 2
          %s1007 = scalar_lea.vmem [#allocation10], %s1006
          %1008 = dma.done %s1004, 32
        $region68: #{tpu_custom_call.1} parent=63 // pred_fallthru
          _
        // Predicated region
        $region69: #{tpu_custom_call.1} parent=63 // pred_check
          %p1009 = pneg %p166
        $region70: #{tpu_custom_call.1} parent=63 // pred_check_branch
          %1011 = sbr.rel (%p1009) target = $region72
        $region71: #{tpu_custom_call.1} parent=63 // pred_region
          %s1012 = sand.u32 %s151, 1
          %s1013 = scalar_lea.sflag [#allocation12], %s1012
          %s1014 = sand.u32 %s151, 1
          %s1015 = smul.addr %s1014, 2
          %s1016 = scalar_lea.vmem [#allocation11], %s1015
          %1017 = dma.done %s1013, 32
        $region72: #{tpu_custom_call.1} parent=63 // pred_fallthru
          _
      $region64: #{tpu_custom_call.1} parent=5 // pred_fallthru
        _
    $region6: #{tpu_custom_call.1} parent=1 // loop_footer
      %s26 = sadd.s32 1, %s22
    $region7: #{tpu_custom_call.1} parent=1 // loop_footer_branch
      %21 = sbr.rel target = $region3
    $region8: #{tpu_custom_call.1} parent=1 // loop_exit
      _
    %1018 = vsyncpa [#allocation5], 1
    %s1019 = scalar_lea.sflag [#allocation5], 1
    %1020 = vsyncpa %s1019, 1
    %1021 = vsyncpa [#allocation8], 1
    %1022 = vsyncpa [#allocation6], 1
    %s1023 = scalar_lea.sflag [#allocation6], 1
    %1024 = vsyncpa %s1023, 1
    %1025 = vsyncpa [#allocation12], 1
    %s1026 = scalar_lea.sflag [#allocation12], 1
    %1027 = vsyncpa %s1026, 1

</llo_original>
